<compile_context>
chip_gen: v7x
topology: tpu7x:2x2x1
jax: 0.10.0
libtpu: 0.0.40
codegen_flags: <defaults>
</compile_context>

<pallas_src>
import jax
import jax.numpy as jnp
import numpy as np
from jax.experimental import pallas as pl
from jax.experimental.pallas import tpu as pltpu

# ---- problem sizes (small, consistent with the module) ----
B = 2          # batch
C_IN = 8       # in_channels
FILT = 32      # filters (conv_1 out channels)
T = 16         # time steps
K = 3          # conv_1 kernel size (odd, as required by tf-pad)
PAD = K // 2
LN_EPS = 1e-5

WIDE = C_IN * T      # 128  lane-dense input/output slab width (lane = c*T + t)
HWIDE = FILT * T     # 512  lane-dense hidden slab width      (lane = f*T + t)

assert C_IN == 8 and WIDE == 128, "roll-reduction tree below assumes C_IN=8 and 8*T=128"

# rows of the packed consts slab
ROW_B1, ROW_B2, ROW_G, ROW_BETA = 0, 1, 2, 3


def conv_ffn_kernel(keep_ref,       # (B, WIDE)     f32   keep mask (1.0 where t < lens[b])
                    x_ref,          # (B, WIDE)     f32   flattened NCT input
                    w1_ref,         # (WIDE, HWIDE) bf16  banded conv_1 weight
                    consts_ref,     # (8, HWIDE)    f32   [b1; b2|0; gamma|0; beta|0; 0...]
                    w2_hbm_ref,     # (HWIDE, WIDE) bf16  block-diag conv_2 weight (HBM/ANY)
                    out_ref,        # (B, WIDE)     f32
                    w2_vmem,        # (HWIDE, WIDE) bf16  VMEM landing buffer for conv_2 w
                    w2_sem):        # DMA semaphore
    # Kick off the conv_2 weight DMA first so it overlaps masking + conv_1 (feedback #4).
    w2_copy = pltpu.make_async_copy(w2_hbm_ref, w2_vmem, w2_sem)
    w2_copy.start()

    x = x_ref[...]
    xm = x * keep_ref[...]                     # masked_fill(pad_mask, 0.0) before conv_1

    # conv_1 (C->F, k=3, stride 1, tf 'same' zero-pad) as ONE banded bf16 MXU matmul;
    # the time zero-padding is implicit in the banded weight.
    y1 = jnp.dot(xm.astype(jnp.bfloat16), w1_ref[...],
                 preferred_element_type=jnp.float32) + consts_ref[ROW_B1:ROW_B1 + 1, :]
    h = jnp.maximum(y1, 0.0)                   # ReLU (dropout p=0 -> identity)

    # conv_2 (1x1, F->C) as a block-diagonal bf16 matmul from the hand-DMA'd weight.
    w2_copy.wait()
    y2 = jnp.dot(h.astype(jnp.bfloat16), w2_vmem[...],
                 preferred_element_type=jnp.float32) + consts_ref[ROW_B2:ROW_B2 + 1, 0:WIDE]

    r = y2 + x                                 # residual with the UNMASKED input (as module)

    # post-LN over channels. Lanes are c*T + t, so the channel group of lane l is
    # {l + j*T (mod 8*T=128)}: a log2(C_IN)=3 roll-and-add tree (XLU) puts the group sum
    # in every lane — replaces the two 128x128 LN matmuls (feedback #1), numerically
    # identical to them (tree sum).
    def group_mean(v):
        s = v
        s = s + pltpu.roll(s, shift=T, axis=1)
        s = s + pltpu.roll(s, shift=2 * T, axis=1)
        s = s + pltpu.roll(s, shift=4 * T, axis=1)
        return s * (1.0 / C_IN)

    mean = group_mean(r)
    d = r - mean
    var = group_mean(d * d)
    out = (d * jax.lax.rsqrt(var + LN_EPS) * consts_ref[ROW_G:ROW_G + 1, 0:WIDE]
           + consts_ref[ROW_BETA:ROW_BETA + 1, 0:WIDE])
    out_ref[...] = out.astype(out_ref.dtype)


def prepare_params(w1, b1, w2, b2, gamma, beta):
    """One-time (init-time) expansion of the module parameters into the lane-dense forms
    the kernel consumes (feedback #6: hoisted out of the per-call forward), weights in bf16."""
    # conv_1 weight folded into a banded (C*T, F*T) matrix:
    #   w1_big[c*T + t', f*T + t] = sum_k w1[f, c, k] * [t' == t + k - 1]
    # (tf 'same' pad with stride 1 == zero pad of K//2, so out-of-range taps simply drop out)
    band = jnp.stack([jnp.eye(T, k=1 - k, dtype=jnp.float32) for k in range(K)])  # (K, t', t)
    w1_big = jnp.einsum('fck,kut->cuft', w1.astype(jnp.float32), band,
                        precision=jax.lax.Precision.HIGHEST).reshape(WIDE, HWIDE)
    # 1x1 conv_2 weight as a block-diagonal (F*T, C*T) matrix
    w2_big = jnp.einsum('cf,ut->fuct', w2[:, :, 0].astype(jnp.float32),
                        jnp.eye(T, dtype=jnp.float32),
                        precision=jax.lax.Precision.HIGHEST).reshape(HWIDE, WIDE)

    # All small per-lane vectors packed into ONE (8, HWIDE) slab (feedback #5: fewer DMAs).
    consts = jnp.zeros((8, HWIDE), jnp.float32)
    consts = consts.at[ROW_B1, :].set(jnp.repeat(b1.astype(jnp.float32), T))
    consts = consts.at[ROW_B2, :WIDE].set(jnp.repeat(b2.astype(jnp.float32), T))
    consts = consts.at[ROW_G, :WIDE].set(jnp.repeat(gamma.astype(jnp.float32), T))
    consts = consts.at[ROW_BETA, :WIDE].set(jnp.repeat(beta.astype(jnp.float32), T))

    # bf16 weight storage halves HBM->VMEM weight bytes and hits the bf16-native MXU path
    # on all generations (feedback #3); matmuls still accumulate in f32.
    return w1_big.astype(jnp.bfloat16), w2_big.astype(jnp.bfloat16), consts


@jax.jit
def conv_ffn_forward(x_nct, lens, w1_big, w2_big, consts):
    """x_nct: (B, C_IN, T) f32; lens: (B,) int. Returns (out_nct, lens, pad_mask)."""
    # Lane-dense input slab: the raw NCT buffer flattened row-major -> lane = c*T + t
    # (a free reshape; no wrapper transposes or pads).
    x_wide = x_nct.astype(jnp.float32).reshape(B, WIDE)
    lens32 = lens.astype(jnp.int32)

    # keep-mask computed here (feedback #5): drops the lens / time-index kernel inputs.
    t_lane = jnp.arange(WIDE, dtype=jnp.int32) % T
    keep = (t_lane[None, :] < lens32[:, None]).astype(jnp.float32)        # (B, WIDE)

    grid_spec = pltpu.PrefetchScalarGridSpec(
        num_scalar_prefetch=0,
        grid=(1,),                                            # single program: whole problem
        in_specs=[
            pl.BlockSpec((B, WIDE), lambda i: (0, 0)),        # keep mask
            pl.BlockSpec((B, WIDE), lambda i: (0, 0)),        # x slab (conv input + residual)
            pl.BlockSpec((WIDE, HWIDE), lambda i: (0, 0)),    # conv_1 banded weight (bf16)
            pl.BlockSpec((8, HWIDE), lambda i: (0, 0)),       # packed b1/b2/gamma/beta
            pl.BlockSpec(memory_space=pl.ANY),                # conv_2 weight: hand-DMA'd
        ],
        out_specs=pl.BlockSpec((B, WIDE), lambda i: (0, 0)),
        scratch_shapes=[
            pltpu.VMEM((HWIDE, WIDE), jnp.bfloat16),          # conv_2 weight landing buffer
            pltpu.SemaphoreType.DMA(()),
        ],
    )

    out_wide = pl.pallas_call(
        conv_ffn_kernel,
        out_shape=jax.ShapeDtypeStruct((B, WIDE), jnp.float32),
        grid_spec=grid_spec,
        compiler_params=pltpu.CompilerParams(dimension_semantics=("arbitrary",)),
    )(keep, x_wide, w1_big, consts, w2_big)

    out_nct = out_wide.reshape(B, C_IN, T)     # free reshape back to the NCT layout
    # stride == 1 for both convs -> lens / pad_mask pass through unchanged (as in the module)
    pad_mask = jnp.arange(T, dtype=jnp.int32)[None, :] >= lens32[:, None]
    return out_nct, lens, pad_mask


def reference_forward(x_nct, lens, w1, b1, w2, b2, gamma, beta):
    """Pure-JAX f32 reference mirroring the PyTorch module semantics."""
    mask = jnp.arange(T)[None, :] >= lens[:, None]                       # (B, T)
    xm = jnp.where(mask[:, None, :], 0.0, x_nct)
    xp = jnp.pad(xm, ((0, 0), (0, 0), (PAD, PAD)))                       # tf 'same', stride 1
    y1 = jax.lax.conv_general_dilated(xp, w1, (1,), 'VALID',
                                      dimension_numbers=('NCH', 'OIH', 'NCH'))
    y1 = y1 + b1[None, :, None]
    h = jnp.maximum(y1, 0.0)
    y2 = jax.lax.conv_general_dilated(h, w2, (1,), 'VALID',
                                      dimension_numbers=('NCH', 'OIH', 'NCH'))
    y2 = y2 + b2[None, :, None]
    r = y2 + x_nct
    rt = jnp.transpose(r, (0, 2, 1))
    mean = rt.mean(-1, keepdims=True)
    var = ((rt - mean) ** 2).mean(-1, keepdims=True)
    out = (rt - mean) / jnp.sqrt(var + LN_EPS) * gamma + beta
    return jnp.transpose(out, (0, 2, 1))


if __name__ == "__main__":
    key = jax.random.PRNGKey(0)
    k_x, k_w1, k_b1, k_w2, k_b2, k_g, k_be = jax.random.split(key, 7)

    # deterministic synthetic parameters (shapes from the module's __init__)
    x = jax.random.normal(k_x, (B, C_IN, T), dtype=jnp.float32)              # NCT input
    lens = jnp.array([T, T - 5], dtype=jnp.int32)
    w1 = 0.1 * jax.random.normal(k_w1, (FILT, C_IN, K), dtype=jnp.float32)   # conv_1.weight
    b1 = 0.1 * jax.random.normal(k_b1, (FILT,), dtype=jnp.float32)           # conv_1.bias
    w2 = 0.1 * jax.random.normal(k_w2, (C_IN, FILT, 1), dtype=jnp.float32)   # conv_2.weight
    b2 = 0.1 * jax.random.normal(k_b2, (C_IN,), dtype=jnp.float32)           # conv_2.bias
    gamma = 1.0 + 0.1 * jax.random.normal(k_g, (C_IN,), dtype=jnp.float32)   # LayerNorm.weight
    beta = 0.1 * jax.random.normal(k_be, (C_IN,), dtype=jnp.float32)         # LayerNorm.bias

    # one-time parameter expansion (hoisted out of the per-call path, feedback #6)
    w1_big, w2_big, consts = prepare_params(w1, b1, w2, b2, gamma, beta)

    out, out_lens, out_mask = conv_ffn_forward(x, lens, w1_big, w2_big, consts)
    out = jax.block_until_ready(out)

    ref = reference_forward(x, lens, w1, b1, w2, b2, gamma, beta)
    # Tolerance loosened vs the all-f32 version because the conv weights / dot inputs are
    # now bf16 (perf feedback #3); accumulation is still f32.
    np.testing.assert_allclose(np.asarray(out), np.asarray(ref), rtol=5e-2, atol=5e-2)

    print("KERNEL_OK")
</pallas_src>

<mosaic_0001>
module attributes {stable_mosaic.version = 11 : i64} {
  func.func @conv_ffn_kernel(%arg0: i32, %arg1: memref<2x128xf32, #tpu.memory_space<vmem>>, %arg2: memref<2x128xf32, #tpu.memory_space<vmem>>, %arg3: memref<128x512xbf16, #tpu.memory_space<vmem>>, %arg4: memref<8x512xf32, #tpu.memory_space<vmem>>, %arg5: memref<512x128xbf16, #tpu.memory_space<any>>, %arg6: memref<2x128xf32, #tpu.memory_space<vmem>>, %arg7: memref<512x128xbf16, #tpu.memory_space<vmem>>, %arg8: memref<!tpu.dma_semaphore, #tpu.memory_space<semaphore_mem>>) attributes {dimension_semantics = [#tpu.dimension_semantics<arbitrary>], iteration_bounds = array<i64: 1>, scalar_prefetch = 0 : i64, scratch_operands = 2 : i64, tpu.core_type = #tpu.core_type<tc>, window_params = [{pipeline_mode = #tpu.pipeline_mode<synchronous>, transform_indices = @transform_0, window_bounds = array<i64: 2, 128>}, {pipeline_mode = #tpu.pipeline_mode<synchronous>, transform_indices = @transform_1, window_bounds = array<i64: 2, 128>}, {pipeline_mode = #tpu.pipeline_mode<synchronous>, transform_indices = @transform_2, window_bounds = array<i64: 128, 512>}, {pipeline_mode = #tpu.pipeline_mode<synchronous>, transform_indices = @transform_3, window_bounds = array<i64: 8, 512>}, {}, {pipeline_mode = #tpu.pipeline_mode<synchronous>, transform_indices = @transform_5, window_bounds = array<i64: 2, 128>}]} {
    tpu.enqueue_dma source(%arg5 : memref<512x128xbf16, #tpu.memory_space<any>>) target(%arg7 : memref<512x128xbf16, #tpu.memory_space<vmem>>) target_semaphore(%arg8 : memref<!tpu.dma_semaphore, #tpu.memory_space<semaphore_mem>>)
    %c0 = arith.constant 0 : index
    %c0_0 = arith.constant 0 : index
    %0 = vector.load %arg2[%c0, %c0_0] : memref<2x128xf32, #tpu.memory_space<vmem>>, vector<2x128xf32>
    %c0_1 = arith.constant 0 : index
    %c0_2 = arith.constant 0 : index
    %1 = vector.load %arg1[%c0_1, %c0_2] : memref<2x128xf32, #tpu.memory_space<vmem>>, vector<2x128xf32>
    %2 = arith.mulf %0, %1 : vector<2x128xf32>
    %3 = arith.truncf %2 : vector<2x128xf32> to vector<2x128xbf16>
    %c0_3 = arith.constant 0 : index
    %c0_4 = arith.constant 0 : index
    %4 = vector.load %arg3[%c0_3, %c0_4] : memref<128x512xbf16, #tpu.memory_space<vmem>>, vector<128x512xbf16>
    %cst = arith.constant dense<0.000000e+00> : vector<2x512xf32>
    %5 = tpu.matmul %3, %4, %cst {dimension_numbers = #tpu.dot_dimension_numbers<[1], [0], [0], [1], [0, 0, 1, 1], [], []>} : vector<2x128xbf16>, vector<128x512xbf16>, vector<2x512xf32> -> vector<2x512xf32>
    %c0_5 = arith.constant 0 : index
    %c0_6 = arith.constant 0 : index
    %6 = vector.load %arg4[%c0_5, %c0_6] : memref<8x512xf32, #tpu.memory_space<vmem>>, vector<1x512xf32>
    %7 = vector.broadcast %6 : vector<1x512xf32> to vector<2x512xf32>
    %8 = arith.addf %5, %7 : vector<2x512xf32>
    %cst_7 = arith.constant 0.000000e+00 : f32
    %9 = vector.broadcast %cst_7 : f32 to vector<2x512xf32>
    %10 = arith.maximumf %8, %9 : vector<2x512xf32>
    tpu.wait_dma2 semaphore(%arg8 : memref<!tpu.dma_semaphore, #tpu.memory_space<semaphore_mem>>) src(%arg5 : memref<512x128xbf16, #tpu.memory_space<any>>) dst(%arg7 : memref<512x128xbf16, #tpu.memory_space<vmem>>)
    %11 = arith.truncf %10 : vector<2x512xf32> to vector<2x512xbf16>
    %c0_8 = arith.constant 0 : index
    %c0_9 = arith.constant 0 : index
    %12 = vector.load %arg7[%c0_8, %c0_9] : memref<512x128xbf16, #tpu.memory_space<vmem>>, vector<512x128xbf16>
    %cst_10 = arith.constant dense<0.000000e+00> : vector<2x128xf32>
    %13 = tpu.matmul %11, %12, %cst_10 {dimension_numbers = #tpu.dot_dimension_numbers<[1], [0], [0], [1], [0, 0, 1, 1], [], []>} : vector<2x512xbf16>, vector<512x128xbf16>, vector<2x128xf32> -> vector<2x128xf32>
    %c1 = arith.constant 1 : index
    %c0_11 = arith.constant 0 : index
    %14 = vector.load %arg4[%c1, %c0_11] : memref<8x512xf32, #tpu.memory_space<vmem>>, vector<1x128xf32>
    %15 = vector.broadcast %14 : vector<1x128xf32> to vector<2x128xf32>
    %16 = arith.addf %13, %15 : vector<2x128xf32>
    %17 = arith.addf %16, %0 : vector<2x128xf32>
    %c16_i32 = arith.constant 16 : i32
    %18 = tpu.dynamic_rotate %17 by %c16_i32 dim 1 : vector<2x128xf32>, i32 -> vector<2x128xf32>
    %19 = arith.addf %17, %18 : vector<2x128xf32>
    %c32_i32 = arith.constant 32 : i32
    %20 = tpu.dynamic_rotate %19 by %c32_i32 dim 1 : vector<2x128xf32>, i32 -> vector<2x128xf32>
    %21 = arith.addf %19, %20 : vector<2x128xf32>
    %c64_i32 = arith.constant 64 : i32
    %22 = tpu.dynamic_rotate %21 by %c64_i32 dim 1 : vector<2x128xf32>, i32 -> vector<2x128xf32>
    %23 = arith.addf %21, %22 : vector<2x128xf32>
    %cst_12 = arith.constant 1.250000e-01 : f32
    %24 = vector.broadcast %cst_12 : f32 to vector<2x128xf32>
    %25 = arith.mulf %23, %24 : vector<2x128xf32>
    %26 = arith.subf %17, %25 : vector<2x128xf32>
    %27 = arith.mulf %26, %26 : vector<2x128xf32>
    %c16_i32_13 = arith.constant 16 : i32
    %28 = tpu.dynamic_rotate %27 by %c16_i32_13 dim 1 : vector<2x128xf32>, i32 -> vector<2x128xf32>
    %29 = arith.addf %27, %28 : vector<2x128xf32>
    %c32_i32_14 = arith.constant 32 : i32
    %30 = tpu.dynamic_rotate %29 by %c32_i32_14 dim 1 : vector<2x128xf32>, i32 -> vector<2x128xf32>
    %31 = arith.addf %29, %30 : vector<2x128xf32>
    %c64_i32_15 = arith.constant 64 : i32
    %32 = tpu.dynamic_rotate %31 by %c64_i32_15 dim 1 : vector<2x128xf32>, i32 -> vector<2x128xf32>
    %33 = arith.addf %31, %32 : vector<2x128xf32>
    %cst_16 = arith.constant 1.250000e-01 : f32
    %34 = vector.broadcast %cst_16 : f32 to vector<2x128xf32>
    %35 = arith.mulf %33, %34 : vector<2x128xf32>
    %cst_17 = arith.constant 9.99999974E-6 : f32
    %36 = vector.broadcast %cst_17 : f32 to vector<2x128xf32>
    %37 = arith.addf %35, %36 : vector<2x128xf32>
    %38 = math.rsqrt %37 : vector<2x128xf32>
    %39 = arith.mulf %26, %38 : vector<2x128xf32>
    %c2 = arith.constant 2 : index
    %c0_18 = arith.constant 0 : index
    %40 = vector.load %arg4[%c2, %c0_18] : memref<8x512xf32, #tpu.memory_space<vmem>>, vector<1x128xf32>
    %41 = vector.broadcast %40 : vector<1x128xf32> to vector<2x128xf32>
    %42 = arith.mulf %39, %41 : vector<2x128xf32>
    %c3 = arith.constant 3 : index
    %c0_19 = arith.constant 0 : index
    %43 = vector.load %arg4[%c3, %c0_19] : memref<8x512xf32, #tpu.memory_space<vmem>>, vector<1x128xf32>
    %44 = vector.broadcast %43 : vector<1x128xf32> to vector<2x128xf32>
    %45 = arith.addf %42, %44 : vector<2x128xf32>
    %c0_20 = arith.constant 0 : index
    %c0_21 = arith.constant 0 : index
    %46 = vector.load %arg6[%c0_20, %c0_21] : memref<2x128xf32, #tpu.memory_space<vmem>>, vector<2x128xf32>
    tpu.vector_store %arg6[%c0_20, %c0_21], %45 {strides = array<i32>} : memref<2x128xf32, #tpu.memory_space<vmem>>, vector<2x128xf32>,
    return
  }
  func.func @transform_0(%arg0: i32) -> (i32, i32) {
    %c0_i32 = arith.constant 0 : i32
    %c0_i32_0 = arith.constant 0 : i32
    %c0_i32_1 = arith.constant 0 : i32
    return %c0_i32, %c0_i32_0 : i32, i32
  }
  func.func @transform_1(%arg0: i32) -> (i32, i32) {
    %c0_i32 = arith.constant 0 : i32
    %c0_i32_0 = arith.constant 0 : i32
    %c0_i32_1 = arith.constant 0 : i32
    return %c0_i32, %c0_i32_0 : i32, i32
  }
  func.func @transform_2(%arg0: i32) -> (i32, i32) {
    %c0_i32 = arith.constant 0 : i32
    %c0_i32_0 = arith.constant 0 : i32
    %c0_i32_1 = arith.constant 0 : i32
    return %c0_i32, %c0_i32_0 : i32, i32
  }
  func.func @transform_3(%arg0: i32) -> (i32, i32) {
    %c0_i32 = arith.constant 0 : i32
    %c0_i32_0 = arith.constant 0 : i32
    %c0_i32_1 = arith.constant 0 : i32
    return %c0_i32, %c0_i32_0 : i32, i32
  }
  func.func @transform_5(%arg0: i32) -> (i32, i32) {
    %c0_i32 = arith.constant 0 : i32
    %c0_i32_0 = arith.constant 0 : i32
    %c0_i32_1 = arith.constant 0 : i32
    return %c0_i32, %c0_i32_0 : i32, i32
  }
}

</mosaic_0001>

<llo_original>
// kernel: conv_ffn_forward.1
$region0: #{conv_ffn_forward.1}
  #allocation0 [shape = 'u32[]', space=smem, size = 0x4, offset = 0x4, fixed_abs, tag = 'smem constant byte address 0x4 - core index']
  #allocation1 [shape = 'u32[144,128]{1,0:T(1,128)}', space=vmem, size = 0x12000, scoped, tag = 'internal scratch']
  #allocation2 [shape = 'bf16[512,128]{1,0:T(16,128)(2,1)}', space=vmem, size = 0x20000, scoped, tag = 'scratch operand']
  #allocation3 [shape = 's32[1]{0}', space=sflag, size = 0x4, scoped, tag = 'scratch operand']
  #allocation6 [shape = 's32[]', space=sflag, size = 0x4, offset = 0, fixed_abs, tag = 'sflag constant byte address 0x0 - dummy sync flag']
  #allocation7 [shape = 's32[]', space=sflag, size = 0x4, offset = 0, fixed_abs, tag = 'sflag constant byte address 0x0 - dummy sync flag']
  #allocation8 [shape = 'u32[]', space=smem, size = 0x4, offset = 0x44, fixed_abs, tag = 'smem constant byte address 0x44 - assertion arg 0']
  #allocation9 [shape = 'u32[]', space=smem, size = 0x4, offset = 0x48, fixed_abs, tag = 'smem constant byte address 0x48 - assertion arg 1']
  %s0 = inlined_call_operand.vmem [shape: f32[2,128], index: 0, kind: input, shape index: {}]
  %s1 = inlined_call_operand.vmem [shape: f32[2,128], index: 1, kind: input, shape index: {}]
  %s2 = inlined_call_operand.hbm [shape: bf16[128,512], index: 2, kind: input, shape index: {}]
  %s3 = inlined_call_operand.vmem [shape: f32[8,512], index: 3, kind: input, shape index: {}]
  %s4 = inlined_call_operand.hbm [shape: bf16[512,128], index: 4, kind: input, shape index: {}]
  %s5 = inlined_call_operand.vmem [shape: f32[2,128], index: 5, kind: output, shape index: {}]
  %s6 = sld [smem:[#allocation0]]
  $region34: #{conv_ffn_forward.1} parent=0
    _
  %s8 = ssub.s32 1, %s6
  %s9 = scalar_select 0, %s8, %s6
  $region1: #{conv_ffn_forward.1} parent=0
    #allocation4 [shape = 'u8[131072]{0}', space=vmem, size = 0x20000, scoped, tag = 'input window, operand 2, single buffered']
    #allocation5 [shape = 's32[1]{0}', space=sflag, size = 0x4, scoped, tag = 'scoped memory for conv_ffn_forward.1']
    %10 = vsyncpa [#allocation5], 0
    // Predicated region
    $region2: #{conv_ffn_forward.1} parent=1 // pred_check
      _
    $region3: #{conv_ffn_forward.1} parent=1 // pred_check_branch
      %12 = sbr.rel (0) target = $region5
    $region4: #{conv_ffn_forward.1} parent=1 // pred_region
      _
    $region5: #{conv_ffn_forward.1} parent=1 // pred_fallthru
      _
    // Predicated region
    $region6: #{conv_ffn_forward.1} parent=1 // pred_check
      _
    $region7: #{conv_ffn_forward.1} parent=1 // pred_check_branch
      %14 = sbr.rel (0) target = $region9
    $region8: #{conv_ffn_forward.1} parent=1 // pred_region
      _
    $region9: #{conv_ffn_forward.1} parent=1 // pred_fallthru
      _
    // Predicated region
    $region10: #{conv_ffn_forward.1} parent=1 // pred_check
      _
    $region11: #{conv_ffn_forward.1} parent=1 // pred_check_branch
      %16 = sbr.rel (0) target = $region13
    $region12: #{conv_ffn_forward.1} parent=1 // pred_region
      %s18 = ssub.s32 4096, 4096
      %19 = vsyncadd [#allocation5], %s18
      %s20 = sshll.u32 [#allocation4], 4
      %s21 = int_to_ptr.vmem [resolvable:$true] %s20
      %26 = dma.hbm_to_vmem [thread:$0]  %s2, 4096, %s21, [#allocation5], 256, 256, 16
    $region13: #{conv_ffn_forward.1} parent=1 // pred_fallthru
      _
    // Predicated region
    $region14: #{conv_ffn_forward.1} parent=1 // pred_check
      _
    $region15: #{conv_ffn_forward.1} parent=1 // pred_check_branch
      %28 = sbr.rel (0) target = $region17
    $region16: #{conv_ffn_forward.1} parent=1 // pred_region
      _
    $region17: #{conv_ffn_forward.1} parent=1 // pred_fallthru
      _
    // Predicated region
    $region18: #{conv_ffn_forward.1} parent=1 // pred_check
      _
    $region19: #{conv_ffn_forward.1} parent=1 // pred_check_branch
      %30 = sbr.rel (0) target = $region21
    $region20: #{conv_ffn_forward.1} parent=1 // pred_region
      %31 = dma.done [#allocation5], 4096
    $region21: #{conv_ffn_forward.1} parent=1 // pred_fallthru
      _
    // Predicated region
    $region22: #{conv_ffn_forward.1} parent=1 // pred_check
      _
    $region23: #{conv_ffn_forward.1} parent=1 // pred_check_branch
      %34 = sbr.rel target = $region25
    $region24: #{conv_ffn_forward.1} parent=1 // pred_region
      %35 = sst [smem:[#allocation8]] [#allocation7]
      %36 = sst [smem:[#allocation9]] [#allocation6]
    $region25: #{conv_ffn_forward.1} parent=1 // pred_fallthru
      _
    %38 = shalt.err (0)
    %s40 = sshll.u32 [#allocation2], 4
    %s41 = int_to_ptr.vmem [resolvable:$true] %s40
    %43 = dma.hbm_to_vmem [thread:$0]  %s4, 4096, %s41, [#allocation3]
    %v44 = vld [vmem:[%s1] sm:$0x3]
    %v45 = vld [vmem:[%s0] sm:$0x3]
    %v46 = vmul.f32 %v44, %v45
    %v47 = vpack.c.bf16 %v46, %v46
    %v48 = vld [vmem:[#allocation4] sm:$0xff]
    %v49 = vld [vmem:[#allocation4 + $0x8] sm:$0xff]
    %v50 = vld [vmem:[#allocation4 + $0x10] sm:$0xff]
    %v51 = vld [vmem:[#allocation4 + $0x18] sm:$0xff]
    %v52 = vld [vmem:[#allocation4 + $0x20] sm:$0xff]
    %v53 = vld [vmem:[#allocation4 + $0x28] sm:$0xff]
    %v54 = vld [vmem:[#allocation4 + $0x30] sm:$0xff]
    %v55 = vld [vmem:[#allocation4 + $0x38] sm:$0xff]
    %v56 = vld [vmem:[#allocation4 + $0x40] sm:$0xff]
    %v57 = vld [vmem:[#allocation4 + $0x48] sm:$0xff]
    %v58 = vld [vmem:[#allocation4 + $0x50] sm:$0xff]
    %v59 = vld [vmem:[#allocation4 + $0x58] sm:$0xff]
    %v60 = vld [vmem:[#allocation4 + $0x60] sm:$0xff]
    %v61 = vld [vmem:[#allocation4 + $0x68] sm:$0xff]
    %v62 = vld [vmem:[#allocation4 + $0x70] sm:$0xff]
    %v63 = vld [vmem:[#allocation4 + $0x78] sm:$0xff]
    %v64 = vld [vmem:[#allocation4 + $0x80] sm:$0xff]
    %v65 = vld [vmem:[#allocation4 + $0x88] sm:$0xff]
    %v66 = vld [vmem:[#allocation4 + $0x90] sm:$0xff]
    %v67 = vld [vmem:[#allocation4 + $0x98] sm:$0xff]
    %v68 = vld [vmem:[#allocation4 + $0xa0] sm:$0xff]
    %v69 = vld [vmem:[#allocation4 + $0xa8] sm:$0xff]
    %v70 = vld [vmem:[#allocation4 + $0xb0] sm:$0xff]
    %v71 = vld [vmem:[#allocation4 + $0xb8] sm:$0xff]
    %v72 = vld [vmem:[#allocation4 + $0xc0] sm:$0xff]
    %v73 = vld [vmem:[#allocation4 + $0xc8] sm:$0xff]
    %v74 = vld [vmem:[#allocation4 + $0xd0] sm:$0xff]
    %v75 = vld [vmem:[#allocation4 + $0xd8] sm:$0xff]
    %v76 = vld [vmem:[#allocation4 + $0xe0] sm:$0xff]
    %v77 = vld [vmem:[#allocation4 + $0xe8] sm:$0xff]
    %v78 = vld [vmem:[#allocation4 + $0xf0] sm:$0xff]
    %v79 = vld [vmem:[#allocation4 + $0xf8] sm:$0xff]
    %v80 = vld [vmem:[%s3] ss:$8 sm:$0xf]
    %v82 = vlaneseq
    %v83 = vshrl.u32 %v82, 7
    %v84 = vsub.s32 0, %v83
    %v85 = vrot.slane %v80, %v84
    %v86 = vlaneseq
    %v87 = vshrl.u32 %v86, 7
    %v88 = vsub.s32 1, %v87
    %v89 = vrot.slane %v80, %v88
    %v90 = vlaneseq
    %v91 = vshrl.u32 %v90, 7
    %v92 = vsub.s32 2, %v91
    %v93 = vrot.slane %v80, %v92
    %v94 = vlaneseq
    %v95 = vshrl.u32 %v94, 7
    %v96 = vsub.s32 3, %v95
    %v97 = vrot.slane %v80, %v96
    %v134 = vunpack.c.l.b16 %v48
    %v135 = vunpack.c.h.b16 %v48
    %v136 = vunpack.c.l.b16 %v49
    %v137 = vunpack.c.h.b16 %v49
    %v138 = vunpack.c.l.b16 %v50
    %v139 = vunpack.c.h.b16 %v50
    %v140 = vunpack.c.l.b16 %v51
    %v141 = vunpack.c.h.b16 %v51
    %v142 = vunpack.c.l.b16 %v52
    %v143 = vunpack.c.h.b16 %v52
    %v144 = vunpack.c.l.b16 %v53
    %v145 = vunpack.c.h.b16 %v53
    %v146 = vunpack.c.l.b16 %v54
    %v147 = vunpack.c.h.b16 %v54
    %v148 = vunpack.c.l.b16 %v55
    %v149 = vunpack.c.h.b16 %v55
    %v150 = vunpack.c.l.b16 %v56
    %v151 = vunpack.c.h.b16 %v56
    %v152 = vunpack.c.l.b16 %v57
    %v153 = vunpack.c.h.b16 %v57
    %v154 = vunpack.c.l.b16 %v58
    %v155 = vunpack.c.h.b16 %v58
    %v156 = vunpack.c.l.b16 %v59
    %v157 = vunpack.c.h.b16 %v59
    %v158 = vunpack.c.l.b16 %v60
    %v159 = vunpack.c.h.b16 %v60
    %v160 = vunpack.c.l.b16 %v61
    %v161 = vunpack.c.h.b16 %v61
    %v162 = vunpack.c.l.b16 %v62
    %v163 = vunpack.c.h.b16 %v62
    %v164 = vunpack.c.l.b16 %v63
    %v165 = vunpack.c.h.b16 %v63
    %v166 = vunpack.c.l.b16 %v64
    %v167 = vunpack.c.h.b16 %v64
    %v168 = vunpack.c.l.b16 %v65
    %v169 = vunpack.c.h.b16 %v65
    %v170 = vunpack.c.l.b16 %v66
    %v171 = vunpack.c.h.b16 %v66
    %v172 = vunpack.c.l.b16 %v67
    %v173 = vunpack.c.h.b16 %v67
    %v174 = vunpack.c.l.b16 %v68
    %v175 = vunpack.c.h.b16 %v68
    %v176 = vunpack.c.l.b16 %v69
    %v177 = vunpack.c.h.b16 %v69
    %v178 = vunpack.c.l.b16 %v70
    %v179 = vunpack.c.h.b16 %v70
    %v180 = vunpack.c.l.b16 %v71
    %v181 = vunpack.c.h.b16 %v71
    %v182 = vunpack.c.l.b16 %v72
    %v183 = vunpack.c.h.b16 %v72
    %v184 = vunpack.c.l.b16 %v73
    %v185 = vunpack.c.h.b16 %v73
    %v186 = vunpack.c.l.b16 %v74
    %v187 = vunpack.c.h.b16 %v74
    %v188 = vunpack.c.l.b16 %v75
    %v189 = vunpack.c.h.b16 %v75
    %v190 = vunpack.c.l.b16 %v76
    %v191 = vunpack.c.h.b16 %v76
    %v192 = vunpack.c.l.b16 %v77
    %v193 = vunpack.c.h.b16 %v77
    %v194 = vunpack.c.l.b16 %v78
    %v195 = vunpack.c.h.b16 %v78
    %v196 = vunpack.c.l.b16 %v79
    %v197 = vunpack.c.h.b16 %v79
    %v198 = vpack.c.b16 %v138, %v134
    %v199 = vpack.c.b16 %v139, %v135
    %v200 = vpack.c.b16 %v140, %v136
    %v201 = vpack.c.b16 %v141, %v137
    %v202 = vpack.c.b16 %v146, %v142
    %v203 = vpack.c.b16 %v147, %v143
    %v204 = vpack.c.b16 %v148, %v144
    %v205 = vpack.c.b16 %v149, %v145
    %v206 = vpack.c.b16 %v154, %v150
    %v207 = vpack.c.b16 %v155, %v151
    %v208 = vpack.c.b16 %v156, %v152
    %v209 = vpack.c.b16 %v157, %v153
    %v210 = vpack.c.b16 %v162, %v158
    %v211 = vpack.c.b16 %v163, %v159
    %v212 = vpack.c.b16 %v164, %v160
    %v213 = vpack.c.b16 %v165, %v161
    %v214 = vpack.c.b16 %v170, %v166
    %v215 = vpack.c.b16 %v171, %v167
    %v216 = vpack.c.b16 %v172, %v168
    %v217 = vpack.c.b16 %v173, %v169
    %v218 = vpack.c.b16 %v178, %v174
    %v219 = vpack.c.b16 %v179, %v175
    %v220 = vpack.c.b16 %v180, %v176
    %v221 = vpack.c.b16 %v181, %v177
    %v222 = vpack.c.b16 %v186, %v182
    %v223 = vpack.c.b16 %v187, %v183
    %v224 = vpack.c.b16 %v188, %v184
    %v225 = vpack.c.b16 %v189, %v185
    %v226 = vpack.c.b16 %v194, %v190
    %v227 = vpack.c.b16 %v195, %v191
    %v228 = vpack.c.b16 %v196, %v192
    %v229 = vpack.c.b16 %v197, %v193
    %262 = vmatprep.subr.bf16.mxu0 %v199
    %263 = vmatpush1.bf16.msra.mxu0 %v198
    %264 = vmatprep.subr.bf16.mxu0 %v203
    %265 = vmatpush1.bf16.msra.mxu0 %v202
    %266 = vmatprep.subr.bf16.mxu0 %v207
    %267 = vmatpush1.bf16.msra.mxu0 %v206
    %268 = vmatprep.subr.bf16.mxu0 %v211
    %269 = vmatpush1.bf16.msra.mxu0 %v210
    %270 = vmatprep.subr.bf16.mxu0 %v215
    %271 = vmatpush1.bf16.msra.mxu0 %v214
    %272 = vmatprep.subr.bf16.mxu0 %v219
    %273 = vmatpush1.bf16.msra.mxu0 %v218
    %274 = vmatprep.subr.bf16.mxu0 %v223
    %275 = vmatpush1.bf16.msra.mxu0 %v222
    %276 = vmatprep.subr.bf16.mxu0 %v227
    %277 = vmatpush1.bf16.msra.mxu0 %v226
    %278 = vmatprep.subr.bf16.mxu0 0
    %279 = vmatpush1.bf16.msra.mxu0 0
    %280 = vmatprep.subr.bf16.mxu0 0
    %281 = vmatpush1.bf16.msra.mxu0 0
    %282 = vmatprep.subr.bf16.mxu0 0
    %283 = vmatpush1.bf16.msra.mxu0 0
    %284 = vmatprep.subr.bf16.mxu0 0
    %285 = vmatpush1.bf16.msra.mxu0 0
    %286 = vmatprep.subr.bf16.mxu0 0
    %287 = vmatpush1.bf16.msra.mxu0 0
    %288 = vmatprep.subr.bf16.mxu0 0
    %289 = vmatpush1.bf16.msra.mxu0 0
    %290 = vmatprep.subr.bf16.mxu0 0
    %291 = vmatpush1.bf16.msra.mxu0 0
    %292 = vmatprep.subr.bf16.mxu0 0
    %293 = vmatpush1.bf16.msra.mxu0 0
    %294 = vmatprep.mubr.bf16.mxu0 0
    %295 = vmatmul.mubr.bf16.gmra.mrb[0].mxu0 %v47
    %v296 = vpop.f32.mrb[0].mxu0
    %v297 = vadd.f32 %v85, %v296
    %v298 = vpop.f32.mrb[0].mxu0
    %v299 = vadd.f32 %v89, %v298
    %v300 = vpop.f32.mrb[0].mxu0
    %v301 = vpop.f32.mrb[0].mxu0
    %302 = vdwg.mxu0
    %303 = vmatprep.subr.bf16.mxu0 %v201
    %304 = vmatpush1.bf16.msra.mxu0 %v200
    %305 = vmatprep.subr.bf16.mxu0 %v205
    %306 = vmatpush1.bf16.msra.mxu0 %v204
    %307 = vmatprep.subr.bf16.mxu0 %v209
    %308 = vmatpush1.bf16.msra.mxu0 %v208
    %309 = vmatprep.subr.bf16.mxu0 %v213
    %310 = vmatpush1.bf16.msra.mxu0 %v212
    %311 = vmatprep.subr.bf16.mxu0 %v217
    %312 = vmatpush1.bf16.msra.mxu0 %v216
    %313 = vmatprep.subr.bf16.mxu0 %v221
    %314 = vmatpush1.bf16.msra.mxu0 %v220
    %315 = vmatprep.subr.bf16.mxu0 %v225
    %316 = vmatpush1.bf16.msra.mxu0 %v224
    %317 = vmatprep.subr.bf16.mxu0 %v229
    %318 = vmatpush1.bf16.msra.mxu0 %v228
    %319 = vmatprep.subr.bf16.mxu0 0
    %320 = vmatpush1.bf16.msra.mxu0 0
    %321 = vmatprep.subr.bf16.mxu0 0
    %322 = vmatpush1.bf16.msra.mxu0 0
    %323 = vmatprep.subr.bf16.mxu0 0
    %324 = vmatpush1.bf16.msra.mxu0 0
    %325 = vmatprep.subr.bf16.mxu0 0
    %326 = vmatpush1.bf16.msra.mxu0 0
    %327 = vmatprep.subr.bf16.mxu0 0
    %328 = vmatpush1.bf16.msra.mxu0 0
    %329 = vmatprep.subr.bf16.mxu0 0
    %330 = vmatpush1.bf16.msra.mxu0 0
    %331 = vmatprep.subr.bf16.mxu0 0
    %332 = vmatpush1.bf16.msra.mxu0 0
    %333 = vmatprep.subr.bf16.mxu0 0
    %334 = vmatpush1.bf16.msra.mxu0 0
    %335 = vmatprep.mubr.bf16.mxu0 0
    %336 = vmatmul.mubr.bf16.gmra.mrb[0].mxu0 %v47
    %v337 = vpop.f32.mrb[0].mxu0
    %v338 = vadd.f32 %v93, %v337
    %v339 = vpop.f32.mrb[0].mxu0
    %v340 = vadd.f32 %v97, %v339
    %v341 = vpop.f32.mrb[0].mxu0
    %v342 = vpop.f32.mrb[0].mxu0
    %343 = vdwg.mxu0
    %v344 = vmax.f32 %v297, 0.0
    %v345 = vmax.f32 %v299, 0.0
    %v346 = vmax.f32 %v338, 0.0
    %v347 = vmax.f32 %v340, 0.0
    %s348 = smul.u32 4, 64
    %s349 = smul.u32 %s348, 1
    %s350 = sshll.u32 %s349, 4
    %351 = dma.done [#allocation3], %s350
    %v352 = vpack.c.bf16 %v344, %v344
    %v353 = vpack.c.bf16 %v345, %v345
    %v354 = vpack.c.bf16 %v346, %v346
    %v355 = vpack.c.bf16 %v347, %v347
    %v356 = vld [vmem:[#allocation2] sm:$0xff]
    %v357 = vld [vmem:[#allocation2 + $0x8] sm:$0xff]
    %v358 = vld [vmem:[#allocation2 + $0x10] sm:$0xff]
    %v359 = vld [vmem:[#allocation2 + $0x18] sm:$0xff]
    %v360 = vld [vmem:[#allocation2 + $0x20] sm:$0xff]
    %v361 = vld [vmem:[#allocation2 + $0x28] sm:$0xff]
    %v362 = vld [vmem:[#allocation2 + $0x30] sm:$0xff]
    %v363 = vld [vmem:[#allocation2 + $0x38] sm:$0xff]
    %v364 = vld [vmem:[#allocation2 + $0x40] sm:$0xff]
    %v365 = vld [vmem:[#allocation2 + $0x48] sm:$0xff]
    %v366 = vld [vmem:[#allocation2 + $0x50] sm:$0xff]
    %v367 = vld [vmem:[#allocation2 + $0x58] sm:$0xff]
    %v368 = vld [vmem:[#allocation2 + $0x60] sm:$0xff]
    %v369 = vld [vmem:[#allocation2 + $0x68] sm:$0xff]
    %v370 = vld [vmem:[#allocation2 + $0x70] sm:$0xff]
    %v371 = vld [vmem:[#allocation2 + $0x78] sm:$0xff]
    %v372 = vld [vmem:[#allocation2 + $0x80] sm:$0xff]
    %v373 = vld [vmem:[#allocation2 + $0x88] sm:$0xff]
    %v374 = vld [vmem:[#allocation2 + $0x90] sm:$0xff]
    %v375 = vld [vmem:[#allocation2 + $0x98] sm:$0xff]
    %v376 = vld [vmem:[#allocation2 + $0xa0] sm:$0xff]
    %v377 = vld [vmem:[#allocation2 + $0xa8] sm:$0xff]
    %v378 = vld [vmem:[#allocation2 + $0xb0] sm:$0xff]
    %v379 = vld [vmem:[#allocation2 + $0xb8] sm:$0xff]
    %v380 = vld [vmem:[#allocation2 + $0xc0] sm:$0xff]
    %v381 = vld [vmem:[#allocation2 + $0xc8] sm:$0xff]
    %v382 = vld [vmem:[#allocation2 + $0xd0] sm:$0xff]
    %v383 = vld [vmem:[#allocation2 + $0xd8] sm:$0xff]
    %v384 = vld [vmem:[#allocation2 + $0xe0] sm:$0xff]
    %v385 = vld [vmem:[#allocation2 + $0xe8] sm:$0xff]
    %v386 = vld [vmem:[#allocation2 + $0xf0] sm:$0xff]
    %v387 = vld [vmem:[#allocation2 + $0xf8] sm:$0xff]
    %v388 = vld [vmem:[%s3 + $0x1] ss:$0 sm:$0xff]
    %389 = vmatprep.subr.bf16.mxu0 0
    %390 = vmatpush1.bf16.msra.mxu0 %v356
    %391 = vmatprep.subr.bf16.mxu0 0
    %392 = vmatpush1.bf16.msra.mxu0 %v357
    %393 = vmatprep.subr.bf16.mxu0 0
    %394 = vmatpush1.bf16.msra.mxu0 %v358
    %395 = vmatprep.subr.bf16.mxu0 0
    %396 = vmatpush1.bf16.msra.mxu0 %v359
    %397 = vmatprep.subr.bf16.mxu0 0
    %398 = vmatpush1.bf16.msra.mxu0 %v360
    %399 = vmatprep.subr.bf16.mxu0 0
    %400 = vmatpush1.bf16.msra.mxu0 %v361
    %401 = vmatprep.subr.bf16.mxu0 0
    %402 = vmatpush1.bf16.msra.mxu0 %v362
    %403 = vmatprep.subr.bf16.mxu0 0
    %404 = vmatpush1.bf16.msra.mxu0 %v363
    %405 = vmatprep.subr.bf16.mxu0 0
    %406 = vmatpush1.bf16.msra.mxu0 %v364
    %407 = vmatprep.subr.bf16.mxu0 0
    %408 = vmatpush1.bf16.msra.mxu0 %v365
    %409 = vmatprep.subr.bf16.mxu0 0
    %410 = vmatpush1.bf16.msra.mxu0 %v366
    %411 = vmatprep.subr.bf16.mxu0 0
    %412 = vmatpush1.bf16.msra.mxu0 %v367
    %413 = vmatprep.subr.bf16.mxu0 0
    %414 = vmatpush1.bf16.msra.mxu0 %v368
    %415 = vmatprep.subr.bf16.mxu0 0
    %416 = vmatpush1.bf16.msra.mxu0 %v369
    %417 = vmatprep.subr.bf16.mxu0 0
    %418 = vmatpush1.bf16.msra.mxu0 %v370
    %419 = vmatprep.subr.bf16.mxu0 0
    %420 = vmatpush1.bf16.msra.mxu0 %v371
    %421 = vmatprep.mubr.bf16.mxu0 %v353
    %422 = vmatmul.mubr.bf16.gmra.mrb[0].mxu0 %v352
    %v423 = vpop.f32.mrb[0].mxu0
    %v424 = vadd.f32 %v388, %v423
    %v425 = vpop.f32.mrb[0].mxu0
    %v426 = vpop.f32.mrb[0].mxu0
    %v427 = vpop.f32.mrb[0].mxu0
    %428 = vdwg.mxu0
    %429 = vmatprep.subr.bf16.mxu0 0
    %430 = vmatpush1.bf16.msra.mxu0 %v372
    %431 = vmatprep.subr.bf16.mxu0 0
    %432 = vmatpush1.bf16.msra.mxu0 %v373
    %433 = vmatprep.subr.bf16.mxu0 0
    %434 = vmatpush1.bf16.msra.mxu0 %v374
    %435 = vmatprep.subr.bf16.mxu0 0
    %436 = vmatpush1.bf16.msra.mxu0 %v375
    %437 = vmatprep.subr.bf16.mxu0 0
    %438 = vmatpush1.bf16.msra.mxu0 %v376
    %439 = vmatprep.subr.bf16.mxu0 0
    %440 = vmatpush1.bf16.msra.mxu0 %v377
    %441 = vmatprep.subr.bf16.mxu0 0
    %442 = vmatpush1.bf16.msra.mxu0 %v378
    %443 = vmatprep.subr.bf16.mxu0 0
    %444 = vmatpush1.bf16.msra.mxu0 %v379
    %445 = vmatprep.subr.bf16.mxu0 0
    %446 = vmatpush1.bf16.msra.mxu0 %v380
    %447 = vmatprep.subr.bf16.mxu0 0
    %448 = vmatpush1.bf16.msra.mxu0 %v381
    %449 = vmatprep.subr.bf16.mxu0 0
    %450 = vmatpush1.bf16.msra.mxu0 %v382
    %451 = vmatprep.subr.bf16.mxu0 0
    %452 = vmatpush1.bf16.msra.mxu0 %v383
    %453 = vmatprep.subr.bf16.mxu0 0
    %454 = vmatpush1.bf16.msra.mxu0 %v384
    %455 = vmatprep.subr.bf16.mxu0 0
    %456 = vmatpush1.bf16.msra.mxu0 %v385
    %457 = vmatprep.subr.bf16.mxu0 0
    %458 = vmatpush1.bf16.msra.mxu0 %v386
    %459 = vmatprep.subr.bf16.mxu0 0
    %460 = vmatpush1.bf16.msra.mxu0 %v387
    %461 = vmatprep.mubr.bf16.mxu0 %v355
    %462 = vmatmul.mubr.bf16.gmra.mrb[0].mxu0 %v354
    %v463 = vpop.f32.mrb[0].mxu0
    %v464 = vadd.f32 %v424, %v463
    %v465 = vpop.f32.mrb[0].mxu0
    %v466 = vpop.f32.mrb[0].mxu0
    %v467 = vpop.f32.mrb[0].mxu0
    %468 = vdwg.mxu0
    %v469 = vadd.f32 %v464, %v44
    %470 = vrot.lane.b32.xlu0 %v469, 16
    %v471 = vpop.permute.xlu0 %470
    %v472 = vadd.f32 %v469, %v471
    %473 = vrot.lane.b32.xlu0 %v472, 32
    %v474 = vpop.permute.xlu0 %473
    %v475 = vadd.f32 %v472, %v474
    %476 = vrot.lane.b32.xlu0 %v475, 64
    %v477 = vpop.permute.xlu0 %476
    %v478 = vadd.f32 %v475, %v477
    %v479 = vmul.f32 %v478, 0.125
    %v480 = vsub.f32 %v469, %v479
    %v481 = vmul.f32 %v480, %v480
    %482 = vrot.lane.b32.xlu0 %v481, 16
    %v483 = vpop.permute.xlu0 %482
    %v484 = vadd.f32 %v481, %v483
    %485 = vrot.lane.b32.xlu0 %v484, 32
    %v486 = vpop.permute.xlu0 %485
    %v487 = vadd.f32 %v484, %v486
    %488 = vrot.lane.b32.xlu0 %v487, 64
    %v489 = vpop.permute.xlu0 %488
    %v490 = vadd.f32 %v487, %v489
    %v491 = vmul.f32 %v490, 0.125
    %v492 = vadd.f32 %v491, 1e-05
    %v493 = vrsqrt.pop %v492
    %v494 = vmul.f32 %v480, %v493
    %v495 = vld [vmem:[%s3 + $0x2] ss:$0 sm:$0xff]
    %v496 = vmul.f32 %v494, %v495
    %v497 = vld [vmem:[%s3 + $0x3] ss:$0 sm:$0xff]
    %v498 = vadd.f32 %v496, %v497
    %499 = vst [vmem:[%s5] sm:$0x3] %v498
    // Predicated region
    $region26: #{conv_ffn_forward.1} parent=1 // pred_check
      _
    $region27: #{conv_ffn_forward.1} parent=1 // pred_check_branch
      %501 = sbr.rel (0) target = $region29
    $region28: #{conv_ffn_forward.1} parent=1 // pred_region
      _
    $region29: #{conv_ffn_forward.1} parent=1 // pred_fallthru
      _
    // Predicated region
    $region30: #{conv_ffn_forward.1} parent=1 // pred_check
      _
    $region31: #{conv_ffn_forward.1} parent=1 // pred_check_branch
      %503 = sbr.rel (0) target = $region33
    $region32: #{conv_ffn_forward.1} parent=1 // pred_region
      _
    $region33: #{conv_ffn_forward.1} parent=1 // pred_fallthru
      _
    %504 = vsyncpa [#allocation5], 1
  %505 = vsyncmov [#allocation3]
  %s506 = vpop.sfrf %505
  %p507 = scmp.eq.s32.totalorder %s506, 0
  %p508 = pneg %p507
  %510 = shalt.err (%p508)

</llo_original>
